<compile_context>
chip_gen: v6e
topology: v6e:2x2x1
jax: 0.10.0
libtpu: 0.0.40
codegen_flags: <defaults>
</compile_context>

<pallas_src>
import functools
import math

import jax
import jax.numpy as jnp
from jax.experimental import pallas as pl
from jax.experimental.pallas import tpu as pltpu


def _round_up(x, m):
    return ((x + m - 1) // m) * m


def _pick_tile(dim, target, cap):
    """Pick a tile size (multiple of 128) for one axis of the padded problem.

    Prefers tiles that divide the 128-padded dim exactly (zero padding waste);
    only falls back to round-up padding when no reasonable exact divisor
    exists. Returns (tile, padded_dim)."""
    dim_p = _round_up(dim, 128)
    if dim_p <= target:
        return dim_p, dim_p
    divs = [t for t in range(128, min(dim_p, cap) + 1, 128) if dim_p % t == 0]
    exact = [t for t in divs if t <= target]
    if exact and exact[-1] * 4 >= target:
        return exact[-1], dim_p                    # big enough, zero waste
    over = [t for t in divs if t > target]
    if over:
        return over[0], dim_p                      # slightly over target, zero waste
    return target, _round_up(dim_p, target)        # modest round-up padding


def _agg_bias_kernel(a_ref, y_ref, b_ref, o_ref, acc_ref, *, y_resident, tk):
    """out = A @ Y + b with Y = X @ W^T precomputed (F_out_pad <= F_in_pad).

    Grid = (row_tiles, k_tiles); k is the source-node reduction axis."""
    k = pl.program_id(1)

    @pl.when(k == 0)
    def _init():
        acc_ref[...] = jnp.zeros_like(acc_ref)

    if y_resident:
        start = pl.multiple_of(k * tk, 128)
        y = y_ref[pl.ds(start, tk), :]
    else:
        y = y_ref[...]
    # A travels as int8 in HBM; the int8->bf16/f32 cast is cheap VPU work that
    # hides under the DMA of the next A tile.
    acc_ref[...] += jnp.dot(a_ref[...].astype(y.dtype), y,
                            preferred_element_type=jnp.float32)

    @pl.when(k == pl.num_programs(1) - 1)
    def _finalize():
        o_ref[...] = (acc_ref[...] + b_ref[...]).astype(o_ref.dtype)


def _agg_linear_kernel(a_ref, x_ref, wt_ref, b_ref, o_ref, acc_ref, *,
                       y_resident, tk):
    """out = (A @ X) @ W^T + b (fused epilogue; used when F_out_pad > F_in_pad)."""
    k = pl.program_id(1)

    @pl.when(k == 0)
    def _init():
        acc_ref[...] = jnp.zeros_like(acc_ref)

    if y_resident:
        start = pl.multiple_of(k * tk, 128)
        x = x_ref[pl.ds(start, tk), :]
    else:
        x = x_ref[...]
    acc_ref[...] += jnp.dot(a_ref[...].astype(x.dtype), x,
                            preferred_element_type=jnp.float32)

    @pl.when(k == pl.num_programs(1) - 1)
    def _finalize():
        h = acc_ref[...].astype(wt_ref.dtype)      # bf16 epilogue matmul, f32 acc
        out = jnp.dot(h, wt_ref[...], preferred_element_type=jnp.float32)
        o_ref[...] = (out + b_ref[...]).astype(o_ref.dtype)


def gcn_linear(adj, x, weight, bias, *, tm_target=512, tk_target=2048,
               precise=False, resident_y_max_bytes=8 << 20):
    """GCNLinear forward: out = (A @ X) @ W^T + b.

    adj: (N, N) 0/1 adjacency, adj[dst, src] = 1 iff edge src -> dst.
    x: (N, F_in), weight: (F_out, F_in), bias: (F_out,).
    precise=True keeps features/weights in f32 (A stays int8: 0/1 is exact)."""
    n, f_in = x.shape
    f_out = weight.shape[0]
    out_dtype = x.dtype
    feat_dtype = jnp.float32 if precise else jnp.bfloat16
    feat_bytes = jnp.dtype(feat_dtype).itemsize
    out_bytes = jnp.dtype(out_dtype).itemsize

    f_in_p = _round_up(f_in, 128)
    f_out_p = _round_up(f_out, 128)
    # When the layer projects down (common GCN case) reassociate to A @ (X W^T):
    # less N^2-side work, no resident Wt, smaller accumulator.
    fuse_linear = f_out_p > f_in_p

    # ---- tile selection (zero-waste divisors preferred) ---------------------
    tm, n_rows = _pick_tile(n, tm_target, cap=1024)
    if n_rows == tm and n_rows >= 256:
        # v7x megacore: keep >=2 tiles on the "parallel" row axis.
        halves = [t for t in range(128, n_rows // 2 + 1, 128) if n_rows % t == 0]
        if halves:
            tm = halves[-1]
    tk, n_cols = _pick_tile(n, tk_target, cap=4096)

    # ---- pad operands to lane-dense, 128-aligned shapes ---------------------
    a_p = jnp.pad(adj.astype(jnp.int8), ((0, n_rows - n), (0, n_cols - n)))
    if fuse_linear:
        y_p = jnp.pad(x, ((0, n_cols - n), (0, f_in_p - f_in))).astype(feat_dtype)
        wt_p = jnp.pad(weight.T,
                       ((0, f_in_p - f_in), (0, f_out_p - f_out))).astype(feat_dtype)
        f_y, f_acc = f_in_p, f_in_p
    else:
        prec = jax.lax.Precision.HIGHEST if precise else jax.lax.Precision.DEFAULT
        xw = jnp.dot(x, weight.T, precision=prec)       # tiny (N, F_out) matmul
        y_p = jnp.pad(xw, ((0, n_cols - n), (0, f_out_p - f_out))).astype(feat_dtype)
        wt_p = None
        f_y, f_acc = f_out_p, f_out_p
    b_p = jnp.pad(bias.astype(jnp.float32), (0, f_out_p - f_out)).reshape(1, f_out_p)

    # ---- keep the feature matrix VMEM-resident when it is small -------------
    y_total_bytes = n_cols * f_y * feat_bytes
    y_resident = y_total_bytes <= resident_y_max_bytes

    grid = (n_rows // tm, n_cols // tk)

    a_spec = pl.BlockSpec((tm, tk), lambda i, k: (i, k))
    if y_resident:
        y_spec = pl.BlockSpec((n_cols, f_y), lambda i, k: (0, 0),
                              pipeline_mode=pl.Buffered(1))
    else:
        y_spec = pl.BlockSpec((tk, f_y), lambda i, k: (k, 0))
    b_spec = pl.BlockSpec((1, f_out_p), lambda i, k: (0, 0),
                          pipeline_mode=pl.Buffered(1))

    if fuse_linear:
        wt_spec = pl.BlockSpec((f_in_p, f_out_p), lambda i, k: (0, 0),
                               pipeline_mode=pl.Buffered(1))
        kernel = functools.partial(_agg_linear_kernel, y_resident=y_resident, tk=tk)
        in_specs = [a_spec, y_spec, wt_spec, b_spec]
        operands = (a_p, y_p, wt_p, b_p)
    else:
        kernel = functools.partial(_agg_bias_kernel, y_resident=y_resident, tk=tk)
        in_specs = [a_spec, y_spec, b_spec]
        operands = (a_p, y_p, b_p)

    # ---- VMEM working set -> explicit scoped limit (v5e default is 16 MiB) --
    vmem_est = (2 * tm * tk                                    # A (int8), 2 bufs
                + (y_total_bytes if y_resident else 2 * tk * f_y * feat_bytes)
                + (f_in_p * f_out_p * feat_bytes if fuse_linear else 0)
                + f_out_p * 4                                  # bias
                + tm * f_acc * 4                               # f32 accumulator
                + 2 * tm * f_out_p * out_bytes)                # output, 2 bufs
    vmem_limit = int(min(60 << 20, max(32 << 20, int(vmem_est * 1.5) + (2 << 20))))

    # Advisory cost hint for the XLA scheduler.
    flops = 2 * n_rows * n_cols * f_y
    if fuse_linear:
        flops += 2 * n_rows * f_in_p * f_out_p
    bytes_accessed = (n_rows * n_cols                          # A (int8), read once
                      + (y_total_bytes if y_resident
                         else grid[0] * n_cols * f_y * feat_bytes)
                      + (f_in_p * f_out_p * feat_bytes if fuse_linear else 0)
                      + f_out_p * 4
                      + n_rows * f_out_p * out_bytes)

    out_p = pl.pallas_call(
        kernel,
        out_shape=jax.ShapeDtypeStruct((n_rows, f_out_p), out_dtype),
        grid_spec=pltpu.PrefetchScalarGridSpec(
            num_scalar_prefetch=0,
            grid=grid,
            in_specs=in_specs,
            out_specs=pl.BlockSpec((tm, f_out_p), lambda i, k: (i, 0)),
            scratch_shapes=[pltpu.VMEM((tm, f_acc), jnp.float32)],
        ),
        compiler_params=pltpu.CompilerParams(
            dimension_semantics=("parallel", "arbitrary"),
            vmem_limit_bytes=vmem_limit),
        cost_estimate=pl.CostEstimate(
            flops=int(flops), transcendentals=0,
            bytes_accessed=int(bytes_accessed)),
    )(*operands)

    return out_p[:n, :f_out]


def _reference(adj, x, weight, bias):
    return (adj @ x) @ weight.T + bias


def _make_inputs(key, n_nodes, in_feats, out_feats):
    k_adj, k_x, k_w, k_b = jax.random.split(key, 4)
    # Deterministic random directed graph, A[dst, src] = 1 if edge src->dst.
    adj = (jax.random.uniform(k_adj, (n_nodes, n_nodes)) < 0.3).astype(jnp.float32)
    x = jax.random.normal(k_x, (n_nodes, in_feats), dtype=jnp.float32)
    # nn.Linear(in_feats, out_feats) init: U(-1/sqrt(in), 1/sqrt(in)).
    bound = 1.0 / math.sqrt(in_feats)
    weight = jax.random.uniform(k_w, (out_feats, in_feats),
                                minval=-bound, maxval=bound, dtype=jnp.float32)
    bias = jax.random.uniform(k_b, (out_feats,),
                              minval=-bound, maxval=bound, dtype=jnp.float32)
    return adj, x, weight, bias


if __name__ == "__main__":
    root = jax.random.PRNGKey(0)

    cases = [
        # (n_nodes, in_feats, out_feats, gcn_linear kwargs, tolerance)
        (16, 32, 8, {}, 5e-2),                                 # A @ (X W^T) + b, resident features
        (24, 32, 200, {}, 5e-2),                               # A @ X then fused W^T epilogue
        (24, 32, 200, {"resident_y_max_bytes": 0}, 5e-2),      # blocked-feature pipeline path
        (16, 32, 8, {"precise": True, "resident_y_max_bytes": 0}, 1e-3),  # f32 fidelity path
    ]
    for idx, (n_nodes, in_feats, out_feats, kwargs, tol) in enumerate(cases):
        root, sub = jax.random.split(root)
        adj, x, weight, bias = _make_inputs(sub, n_nodes, in_feats, out_feats)
        out = jax.block_until_ready(gcn_linear(adj, x, weight, bias, **kwargs))
        assert out.shape == (n_nodes, out_feats)
        ref = _reference(adj, x, weight, bias)
        max_err = float(jnp.max(jnp.abs(out - ref)))
        assert jnp.allclose(out, ref, atol=tol, rtol=tol), (idx, max_err)

    print("KERNEL_OK")
</pallas_src>

<mosaic_0001>
module attributes {stable_mosaic.version = 11 : i64} {
  func.func @_agg_bias_kernel(%arg0: i32, %arg1: i32, %arg2: memref<128x128xi8, #tpu.memory_space<vmem>>, %arg3: memref<128x128xbf16, #tpu.memory_space<vmem>>, %arg4: memref<1x128xf32, #tpu.memory_space<vmem>>, %arg5: memref<128x128xf32, #tpu.memory_space<vmem>>, %arg6: memref<128x128xf32, #tpu.memory_space<vmem>>) attributes {dimension_semantics = [#tpu.dimension_semantics<parallel>, #tpu.dimension_semantics<arbitrary>], iteration_bounds = array<i64: 1, 1>, scalar_prefetch = 0 : i64, scratch_operands = 1 : i64, tpu.core_type = #tpu.core_type<tc>, window_params = [{transform_indices = @transform_0, window_bounds = array<i64: 128, 128>}, {pipeline_mode = #tpu.pipeline_mode<synchronous>, transform_indices = @transform_1, window_bounds = array<i64: 128, 128>}, {pipeline_mode = #tpu.pipeline_mode<synchronous>, transform_indices = @transform_2, window_bounds = array<i64: 1, 128>}, {transform_indices = @transform_3, window_bounds = array<i64: 128, 128>}]} {
    %c0_i32 = arith.constant 0 : i32
    %0 = arith.cmpi eq, %arg1, %c0_i32 : i32
    %1 = arith.extui %0 : i1 to i32
    %c0_i32_0 = arith.constant 0 : i32
    %2 = arith.cmpi ne, %1, %c0_i32_0 : i32
    scf.if %2 {
      %cst_9 = arith.constant 0.000000e+00 : f32
      %16 = vector.broadcast %cst_9 : f32 to vector<128x128xf32>
      %c0_10 = arith.constant 0 : index
      %c0_11 = arith.constant 0 : index
      %17 = vector.load %arg6[%c0_10, %c0_11] : memref<128x128xf32, #tpu.memory_space<vmem>>, vector<128x128xf32>
      tpu.vector_store %arg6[%c0_10, %c0_11], %16 {strides = array<i32>} : memref<128x128xf32, #tpu.memory_space<vmem>>, vector<128x128xf32>,
    } else {
    }
    %c128_i32 = arith.constant 128 : i32
    %3 = arith.muli %arg1, %c128_i32 : i32
    %4 = tpu.assume_multiple %3, 128 : i32
    %5 = arith.index_cast %4 : i32 to index
    %c0 = arith.constant 0 : index
    %6 = vector.load %arg3[%5, %c0] : memref<128x128xbf16, #tpu.memory_space<vmem>>, vector<128x128xbf16>
    %c0_1 = arith.constant 0 : index
    %c0_2 = arith.constant 0 : index
    %7 = vector.load %arg6[%c0_1, %c0_2] : memref<128x128xf32, #tpu.memory_space<vmem>>, vector<128x128xf32>
    %c0_3 = arith.constant 0 : index
    %c0_4 = arith.constant 0 : index
    %8 = vector.load %arg2[%c0_3, %c0_4] : memref<128x128xi8, #tpu.memory_space<vmem>>, vector<128x128xi8>
    %9 = arith.sitofp %8 : vector<128x128xi8> to vector<128x128xbf16>
    %cst = arith.constant dense<0.000000e+00> : vector<128x128xf32>
    %10 = tpu.matmul %9, %6, %cst {dimension_numbers = #tpu.dot_dimension_numbers<[1], [0], [0], [1], [0, 0, 1, 1], [], []>} : vector<128x128xbf16>, vector<128x128xbf16>, vector<128x128xf32> -> vector<128x128xf32>
    %11 = arith.addf %7, %10 : vector<128x128xf32>
    %c0_5 = arith.constant 0 : index
    %c0_6 = arith.constant 0 : index
    %12 = vector.load %arg6[%c0_5, %c0_6] : memref<128x128xf32, #tpu.memory_space<vmem>>, vector<128x128xf32>
    tpu.vector_store %arg6[%c0_5, %c0_6], %11 {strides = array<i32>} : memref<128x128xf32, #tpu.memory_space<vmem>>, vector<128x128xf32>,
    %c0_i32_7 = arith.constant 0 : i32
    %13 = arith.cmpi eq, %arg1, %c0_i32_7 : i32
    %14 = arith.extui %13 : i1 to i32
    %c0_i32_8 = arith.constant 0 : i32
    %15 = arith.cmpi ne, %14, %c0_i32_8 : i32
    scf.if %15 {
      %c0_9 = arith.constant 0 : index
      %c0_10 = arith.constant 0 : index
      %16 = vector.load %arg6[%c0_9, %c0_10] : memref<128x128xf32, #tpu.memory_space<vmem>>, vector<128x128xf32>
      %c0_11 = arith.constant 0 : index
      %c0_12 = arith.constant 0 : index
      %17 = vector.load %arg4[%c0_11, %c0_12] : memref<1x128xf32, #tpu.memory_space<vmem>>, vector<1x128xf32>
      %18 = vector.broadcast %17 : vector<1x128xf32> to vector<128x128xf32>
      %19 = arith.addf %16, %18 : vector<128x128xf32>
      %c0_13 = arith.constant 0 : index
      %c0_14 = arith.constant 0 : index
      %20 = vector.load %arg5[%c0_13, %c0_14] : memref<128x128xf32, #tpu.memory_space<vmem>>, vector<128x128xf32>
      tpu.vector_store %arg5[%c0_13, %c0_14], %19 {strides = array<i32>} : memref<128x128xf32, #tpu.memory_space<vmem>>, vector<128x128xf32>,
    } else {
    }
    return
  }
  func.func @transform_0(%arg0: i32, %arg1: i32) -> (i32, i32) {
    %c0_i32 = arith.constant 0 : i32
    return %arg0, %arg1 : i32, i32
  }
  func.func @transform_1(%arg0: i32, %arg1: i32) -> (i32, i32) {
    %c0_i32 = arith.constant 0 : i32
    %c0_i32_0 = arith.constant 0 : i32
    %c0_i32_1 = arith.constant 0 : i32
    return %c0_i32, %c0_i32_0 : i32, i32
  }
  func.func @transform_2(%arg0: i32, %arg1: i32) -> (i32, i32) {
    %c0_i32 = arith.constant 0 : i32
    %c0_i32_0 = arith.constant 0 : i32
    %c0_i32_1 = arith.constant 0 : i32
    return %c0_i32, %c0_i32_0 : i32, i32
  }
  func.func @transform_3(%arg0: i32, %arg1: i32) -> (i32, i32) {
    %c0_i32 = arith.constant 0 : i32
    %c0_i32_0 = arith.constant 0 : i32
    return %arg0, %c0_i32 : i32, i32
  }
}

</mosaic_0001>

<llo_original>
// kernel: tpu_custom_call.1
$region0: #{tpu_custom_call.1}
  #allocation0 [shape = 'u32[]', space=smem, size = 0x4, offset = 0x4, fixed_abs, tag = 'smem constant byte address 0x4 - core index']
  #allocation1 [shape = 'u32[144,128]{1,0:T(1,128)}', space=vmem, size = 0x12000, scoped, tag = 'internal scratch']
  #allocation2 [shape = 'f32[128,128]{1,0:T(8,128)}', space=vmem, size = 0x10000, scoped, tag = 'scratch operand']
  %s0 = inlined_call_operand.hbm [shape: s8[128,128], index: 0, kind: input, shape index: {}]
  %s1 = inlined_call_operand.hbm [shape: bf16[128,128], index: 1, kind: input, shape index: {}]
  %s2 = inlined_call_operand.vmem [shape: f32[1,128], index: 2, kind: input, shape index: {}]
  %s3 = inlined_call_operand.hbm [shape: f32[128,128], index: 3, kind: output, shape index: {}]
  %s4 = sld [smem:[#allocation0]]
  $region38: #{tpu_custom_call.1} parent=0
    _
  %s6 = ssub.s32 1, %s4
  %s7 = scalar_select 0, %s6, %s4
  $region1: #{tpu_custom_call.1} parent=0
    #allocation3 [shape = 'u8[16384]{0}', space=vmem, size = 0x4000, scoped, tag = 'input window, operand 0, single buffered']
    #allocation4 [shape = 's32[1]{0}', space=sflag, size = 0x4, scoped, tag = 'scoped memory for tpu_custom_call.1']
    #allocation5 [shape = 's32[1]{0}', space=sflag, size = 0x4, scoped, tag = 'scoped memory for tpu_custom_call.1']
    #allocation6 [shape = 'u8[32768]{0}', space=vmem, size = 0x8000, scoped, tag = 'input window, operand 1, single buffered']
    #allocation7 [shape = 's32[1]{0}', space=sflag, size = 0x4, scoped, tag = 'scoped memory for tpu_custom_call.1']
    #allocation8 [shape = 'u8[65536]{0}', space=vmem, size = 0x10000, scoped, tag = 'output window, operand 0, single buffered']
    %8 = vsyncpa [#allocation4], 0
    %9 = vsyncpa [#allocation7], 0
    %10 = vsyncpa [#allocation5], 0
    // Predicated region
    $region2: #{tpu_custom_call.1} parent=1 // pred_check
      _
    $region3: #{tpu_custom_call.1} parent=1 // pred_check_branch
      %12 = sbr.rel (0) target = $region5
    $region4: #{tpu_custom_call.1} parent=1 // pred_region
      %s14 = ssub.s32 512, 512
      %15 = vsyncadd [#allocation4], %s14
      %s16 = sshll.u32 [#allocation3], 4
      %s17 = int_to_ptr.vmem [resolvable:$true] %s16
      %22 = dma.hbm_to_vmem [thread:$0]  %s0, 512, %s17, [#allocation4], 128, 128, 8
    $region5: #{tpu_custom_call.1} parent=1 // pred_fallthru
      _
    // Predicated region
    $region6: #{tpu_custom_call.1} parent=1 // pred_check
      _
    $region7: #{tpu_custom_call.1} parent=1 // pred_check_branch
      %24 = sbr.rel (0) target = $region9
    $region8: #{tpu_custom_call.1} parent=1 // pred_region
      %s26 = ssub.s32 1024, 1024
      %27 = vsyncadd [#allocation7], %s26
      %s28 = sshll.u32 [#allocation6], 4
      %s29 = int_to_ptr.vmem [resolvable:$true] %s28
      %34 = dma.hbm_to_vmem [thread:$0]  %s1, 1024, %s29, [#allocation7], 64, 64, 4
    $region9: #{tpu_custom_call.1} parent=1 // pred_fallthru
      _
    // Predicated region
    $region10: #{tpu_custom_call.1} parent=1 // pred_check
      _
    $region11: #{tpu_custom_call.1} parent=1 // pred_check_branch
      %36 = sbr.rel (0) target = $region13
    $region12: #{tpu_custom_call.1} parent=1 // pred_region
      _
    $region13: #{tpu_custom_call.1} parent=1 // pred_fallthru
      _
    // Predicated region
    $region14: #{tpu_custom_call.1} parent=1 // pred_check
      _
    $region15: #{tpu_custom_call.1} parent=1 // pred_check_branch
      %38 = sbr.rel (0) target = $region17
    $region16: #{tpu_custom_call.1} parent=1 // pred_region
      %39 = dma.done [#allocation4], 512
    $region17: #{tpu_custom_call.1} parent=1 // pred_fallthru
      _
    // Predicated region
    $region18: #{tpu_custom_call.1} parent=1 // pred_check
      _
    $region19: #{tpu_custom_call.1} parent=1 // pred_check_branch
      %41 = sbr.rel (0) target = $region21
    $region20: #{tpu_custom_call.1} parent=1 // pred_region
      %42 = dma.done [#allocation7], 1024
    $region21: #{tpu_custom_call.1} parent=1 // pred_fallthru
      _
    %p44 = scmp.eq.s32.totalorder 0, 0
    // Predicated region
    $region22: #{tpu_custom_call.1} parent=1 // pred_check
      %p45 = pneg %p44
    $region23: #{tpu_custom_call.1} parent=1 // pred_check_branch
      %47 = sbr.rel (%p45) target = $region25
    $region24: #{tpu_custom_call.1} parent=1 // pred_region
      %48 = vst [vmem:[#allocation2] sm:$0xff] 0.0
      %49 = vst [vmem:[#allocation2 + $0x8] sm:$0xff] 0.0
      %50 = vst [vmem:[#allocation2 + $0x10] sm:$0xff] 0.0
      %51 = vst [vmem:[#allocation2 + $0x18] sm:$0xff] 0.0
      %52 = vst [vmem:[#allocation2 + $0x20] sm:$0xff] 0.0
      %53 = vst [vmem:[#allocation2 + $0x28] sm:$0xff] 0.0
      %54 = vst [vmem:[#allocation2 + $0x30] sm:$0xff] 0.0
      %55 = vst [vmem:[#allocation2 + $0x38] sm:$0xff] 0.0
      %56 = vst [vmem:[#allocation2 + $0x40] sm:$0xff] 0.0
      %57 = vst [vmem:[#allocation2 + $0x48] sm:$0xff] 0.0
      %58 = vst [vmem:[#allocation2 + $0x50] sm:$0xff] 0.0
      %59 = vst [vmem:[#allocation2 + $0x58] sm:$0xff] 0.0
      %60 = vst [vmem:[#allocation2 + $0x60] sm:$0xff] 0.0
      %61 = vst [vmem:[#allocation2 + $0x68] sm:$0xff] 0.0
      %62 = vst [vmem:[#allocation2 + $0x70] sm:$0xff] 0.0
      %63 = vst [vmem:[#allocation2 + $0x78] sm:$0xff] 0.0
    $region25: #{tpu_custom_call.1} parent=1 // pred_fallthru
      _
    %s64 = smul.u32 0, 128
    %s65 = sshra.s32 %s64, 3
    %s66 = sand.u32 %s64, 7
    %s67 = smul.addr %s65, 4
    %s68 = scalar_lea.vmem [#allocation6], %s67
    %v69 = vld [vmem:[%s68] sm:$0xf]
    %v70 = vld [vmem:[%s68 + $0x4] sm:$0xf]
    %v71 = vld [vmem:[%s68 + $0x8] sm:$0xf]
    %v72 = vld [vmem:[%s68 + $0xc] sm:$0xf]
    %v73 = vld [vmem:[%s68 + $0x10] sm:$0xf]
    %v74 = vld [vmem:[%s68 + $0x14] sm:$0xf]
    %v75 = vld [vmem:[%s68 + $0x18] sm:$0xf]
    %v76 = vld [vmem:[%s68 + $0x1c] sm:$0xf]
    %v77 = vld [vmem:[%s68 + $0x20] sm:$0xf]
    %v78 = vld [vmem:[%s68 + $0x24] sm:$0xf]
    %v79 = vld [vmem:[%s68 + $0x28] sm:$0xf]
    %v80 = vld [vmem:[%s68 + $0x2c] sm:$0xf]
    %v81 = vld [vmem:[%s68 + $0x30] sm:$0xf]
    %v82 = vld [vmem:[%s68 + $0x34] sm:$0xf]
    %v83 = vld [vmem:[%s68 + $0x38] sm:$0xf]
    %v84 = vld [vmem:[%s68 + $0x3c] sm:$0xf]
    %v85 = vld [vmem:[#allocation2] sm:$0xff]
    %v86 = vld [vmem:[#allocation2 + $0x8] sm:$0xff]
    %v87 = vld [vmem:[#allocation2 + $0x10] sm:$0xff]
    %v88 = vld [vmem:[#allocation2 + $0x18] sm:$0xff]
    %v89 = vld [vmem:[#allocation2 + $0x20] sm:$0xff]
    %v90 = vld [vmem:[#allocation2 + $0x28] sm:$0xff]
    %v91 = vld [vmem:[#allocation2 + $0x30] sm:$0xff]
    %v92 = vld [vmem:[#allocation2 + $0x38] sm:$0xff]
    %v93 = vld [vmem:[#allocation2 + $0x40] sm:$0xff]
    %v94 = vld [vmem:[#allocation2 + $0x48] sm:$0xff]
    %v95 = vld [vmem:[#allocation2 + $0x50] sm:$0xff]
    %v96 = vld [vmem:[#allocation2 + $0x58] sm:$0xff]
    %v97 = vld [vmem:[#allocation2 + $0x60] sm:$0xff]
    %v98 = vld [vmem:[#allocation2 + $0x68] sm:$0xff]
    %v99 = vld [vmem:[#allocation2 + $0x70] sm:$0xff]
    %v100 = vld [vmem:[#allocation2 + $0x78] sm:$0xff]
    %v101 = vld [vmem:[#allocation3] sm:$0xff]
    %v102 = vld [vmem:[#allocation3 + $0x8] sm:$0xff]
    %v103 = vld [vmem:[#allocation3 + $0x10] sm:$0xff]
    %v104 = vld [vmem:[#allocation3 + $0x18] sm:$0xff]
    %v105 = vunpack.c.l.s8.bf16 %v101
    %v106 = vunpack.c.h.s8.bf16 %v101
    %v107 = vunpack.c.l.s8.bf16 %v102
    %v108 = vunpack.c.h.s8.bf16 %v102
    %v109 = vunpack.c.l.s8.bf16 %v103
    %v110 = vunpack.c.h.s8.bf16 %v103
    %v111 = vunpack.c.l.s8.bf16 %v104
    %v112 = vunpack.c.h.s8.bf16 %v104
    %v129 = vunpack.c.l.b16 %v69
    %v130 = vunpack.c.l.b16 %v70
    %v131 = vunpack.c.l.b16 %v71
    %v132 = vunpack.c.l.b16 %v72
    %v133 = vunpack.c.l.b16 %v73
    %v134 = vunpack.c.l.b16 %v74
    %v135 = vunpack.c.l.b16 %v75
    %v136 = vunpack.c.l.b16 %v76
    %v137 = vunpack.c.l.b16 %v77
    %v138 = vunpack.c.l.b16 %v78
    %v139 = vunpack.c.l.b16 %v79
    %v140 = vunpack.c.l.b16 %v80
    %v141 = vunpack.c.l.b16 %v81
    %v142 = vunpack.c.l.b16 %v82
    %v143 = vunpack.c.l.b16 %v83
    %v144 = vunpack.c.l.b16 %v84
    %v145 = vpack.c.b16 %v130, %v129
    %v146 = vpack.c.b16 %v132, %v131
    %v147 = vpack.c.b16 %v134, %v133
    %v148 = vpack.c.b16 %v136, %v135
    %v149 = vpack.c.b16 %v138, %v137
    %v150 = vpack.c.b16 %v140, %v139
    %v151 = vpack.c.b16 %v142, %v141
    %v152 = vpack.c.b16 %v144, %v143
    %161 = vmatprep.subr.bf16.mxu0 0
    %162 = vmatpush1.bf16.msra.mxu0 %v152
    %163 = vmatprep.subr.bf16.mxu0 0
    %164 = vmatpush1.bf16.msra.mxu0 %v151
    %165 = vmatprep.subr.bf16.mxu0 0
    %166 = vmatpush1.bf16.msra.mxu0 %v150
    %167 = vmatprep.subr.bf16.mxu0 0
    %168 = vmatpush1.bf16.msra.mxu0 %v149
    %169 = vmatprep.subr.bf16.mxu0 0
    %170 = vmatpush1.bf16.msra.mxu0 %v148
    %171 = vmatprep.subr.bf16.mxu0 0
    %172 = vmatpush1.bf16.msra.mxu0 %v147
    %173 = vmatprep.subr.bf16.mxu0 0
    %174 = vmatpush1.bf16.msra.mxu0 %v146
    %175 = vmatprep.subr.bf16.mxu0 0
    %176 = vmatpush1.bf16.msra.mxu0 %v145
    %177 = vmatprep.subr.bf16.mxu0 0
    %178 = vmatpush2.bf16.msra.mxu0 0
    %179 = vmatprep.subr.bf16.mxu0 0
    %180 = vmatpush2.bf16.msra.mxu0 0
    %181 = vmatprep.subr.bf16.mxu0 0
    %182 = vmatpush2.bf16.msra.mxu0 0
    %183 = vmatprep.subr.bf16.mxu0 0
    %184 = vmatpush2.bf16.msra.mxu0 0
    %185 = vmatprep.subr.bf16.mxu0 0
    %186 = vmatpush2.bf16.msra.mxu0 0
    %187 = vmatprep.subr.bf16.mxu0 0
    %188 = vmatpush2.bf16.msra.mxu0 0
    %189 = vmatprep.subr.bf16.mxu0 0
    %190 = vmatpush2.bf16.msra.mxu0 0
    %191 = vmatprep.subr.bf16.mxu0 0
    %192 = vmatpush2.bf16.msra.mxu0 0
    %193 = vmatprep.mubr.bf16.mxu0 0
    %194 = vmatmul.mubr.bf16.gmra.mxu0 %v105
    %v195 = vpop.f32.mrf.mxu0
    %v196 = vadd.f32 0.0, %v195
    %v197 = vpop.f32.mrf.mxu0
    %v198 = vpop.f32.mrf.mxu0
    %v199 = vadd.f32 0.0, %v198
    %v200 = vpop.f32.mrf.mxu0
    %201 = vmatprep.mubr.bf16.mxu0 0
    %202 = vmatmul.mubr.bf16.gmra.mxu0 %v106
    %v203 = vpop.f32.mrf.mxu0
    %v204 = vadd.f32 0.0, %v203
    %v205 = vpop.f32.mrf.mxu0
    %v206 = vpop.f32.mrf.mxu0
    %v207 = vadd.f32 0.0, %v206
    %v208 = vpop.f32.mrf.mxu0
    %209 = vmatprep.mubr.bf16.mxu0 0
    %210 = vmatmul.mubr.bf16.gmra.mxu0 %v107
    %v211 = vpop.f32.mrf.mxu0
    %v212 = vadd.f32 0.0, %v211
    %v213 = vpop.f32.mrf.mxu0
    %v214 = vpop.f32.mrf.mxu0
    %v215 = vadd.f32 0.0, %v214
    %v216 = vpop.f32.mrf.mxu0
    %217 = vmatprep.mubr.bf16.mxu0 0
    %218 = vmatmul.mubr.bf16.gmra.mxu0 %v108
    %v219 = vpop.f32.mrf.mxu0
    %v220 = vadd.f32 0.0, %v219
    %v221 = vpop.f32.mrf.mxu0
    %v222 = vpop.f32.mrf.mxu0
    %v223 = vadd.f32 0.0, %v222
    %v224 = vpop.f32.mrf.mxu0
    %225 = vmatprep.mubr.bf16.mxu0 0
    %226 = vmatmul.mubr.bf16.gmra.mxu0 %v109
    %v227 = vpop.f32.mrf.mxu0
    %v228 = vadd.f32 0.0, %v227
    %v229 = vpop.f32.mrf.mxu0
    %v230 = vpop.f32.mrf.mxu0
    %v231 = vadd.f32 0.0, %v230
    %v232 = vpop.f32.mrf.mxu0
    %233 = vmatprep.mubr.bf16.mxu0 0
    %234 = vmatmul.mubr.bf16.gmra.mxu0 %v110
    %v235 = vpop.f32.mrf.mxu0
    %v236 = vadd.f32 0.0, %v235
    %v237 = vpop.f32.mrf.mxu0
    %v238 = vpop.f32.mrf.mxu0
    %v239 = vadd.f32 0.0, %v238
    %v240 = vpop.f32.mrf.mxu0
    %241 = vmatprep.mubr.bf16.mxu0 0
    %242 = vmatmul.mubr.bf16.gmra.mxu0 %v111
    %v243 = vpop.f32.mrf.mxu0
    %v244 = vadd.f32 0.0, %v243
    %v245 = vpop.f32.mrf.mxu0
    %v246 = vpop.f32.mrf.mxu0
    %v247 = vadd.f32 0.0, %v246
    %v248 = vpop.f32.mrf.mxu0
    %249 = vmatprep.mubr.bf16.mxu0 0
    %250 = vmatmul.mubr.bf16.gmra.mxu0 %v112
    %v251 = vpop.f32.mrf.mxu0
    %v252 = vadd.f32 0.0, %v251
    %v253 = vpop.f32.mrf.mxu0
    %v254 = vpop.f32.mrf.mxu0
    %v255 = vadd.f32 0.0, %v254
    %v256 = vpop.f32.mrf.mxu0
    %257 = vdwg.mxu0
    %v258 = vadd.f32 %v85, %v196
    %v259 = vadd.f32 %v86, %v199
    %v260 = vadd.f32 %v87, %v204
    %v261 = vadd.f32 %v88, %v207
    %v262 = vadd.f32 %v89, %v212
    %v263 = vadd.f32 %v90, %v215
    %v264 = vadd.f32 %v91, %v220
    %v265 = vadd.f32 %v92, %v223
    %v266 = vadd.f32 %v93, %v228
    %v267 = vadd.f32 %v94, %v231
    %v268 = vadd.f32 %v95, %v236
    %v269 = vadd.f32 %v96, %v239
    %v270 = vadd.f32 %v97, %v244
    %v271 = vadd.f32 %v98, %v247
    %v272 = vadd.f32 %v99, %v252
    %v273 = vadd.f32 %v100, %v255
    %274 = vst [vmem:[#allocation2] sm:$0xff] %v258
    %275 = vst [vmem:[#allocation2 + $0x8] sm:$0xff] %v259
    %276 = vst [vmem:[#allocation2 + $0x10] sm:$0xff] %v260
    %277 = vst [vmem:[#allocation2 + $0x18] sm:$0xff] %v261
    %278 = vst [vmem:[#allocation2 + $0x20] sm:$0xff] %v262
    %279 = vst [vmem:[#allocation2 + $0x28] sm:$0xff] %v263
    %280 = vst [vmem:[#allocation2 + $0x30] sm:$0xff] %v264
    %281 = vst [vmem:[#allocation2 + $0x38] sm:$0xff] %v265
    %282 = vst [vmem:[#allocation2 + $0x40] sm:$0xff] %v266
    %283 = vst [vmem:[#allocation2 + $0x48] sm:$0xff] %v267
    %284 = vst [vmem:[#allocation2 + $0x50] sm:$0xff] %v268
    %285 = vst [vmem:[#allocation2 + $0x58] sm:$0xff] %v269
    %286 = vst [vmem:[#allocation2 + $0x60] sm:$0xff] %v270
    %287 = vst [vmem:[#allocation2 + $0x68] sm:$0xff] %v271
    %288 = vst [vmem:[#allocation2 + $0x70] sm:$0xff] %v272
    %289 = vst [vmem:[#allocation2 + $0x78] sm:$0xff] %v273
    // Predicated region
    $region26: #{tpu_custom_call.1} parent=1 // pred_check
      %p290 = pneg %p44
    $region27: #{tpu_custom_call.1} parent=1 // pred_check_branch
      %292 = sbr.rel (%p290) target = $region29
    $region28: #{tpu_custom_call.1} parent=1 // pred_region
      %v293 = vld [vmem:[#allocation2] sm:$0xff]
      %v294 = vld [vmem:[#allocation2 + $0x8] sm:$0xff]
      %v295 = vld [vmem:[#allocation2 + $0x10] sm:$0xff]
      %v296 = vld [vmem:[#allocation2 + $0x18] sm:$0xff]
      %v297 = vld [vmem:[#allocation2 + $0x20] sm:$0xff]
      %v298 = vld [vmem:[#allocation2 + $0x28] sm:$0xff]
      %v299 = vld [vmem:[#allocation2 + $0x30] sm:$0xff]
      %v300 = vld [vmem:[#allocation2 + $0x38] sm:$0xff]
      %v301 = vld [vmem:[#allocation2 + $0x40] sm:$0xff]
      %v302 = vld [vmem:[#allocation2 + $0x48] sm:$0xff]
      %v303 = vld [vmem:[#allocation2 + $0x50] sm:$0xff]
      %v304 = vld [vmem:[#allocation2 + $0x58] sm:$0xff]
      %v305 = vld [vmem:[#allocation2 + $0x60] sm:$0xff]
      %v306 = vld [vmem:[#allocation2 + $0x68] sm:$0xff]
      %v307 = vld [vmem:[#allocation2 + $0x70] sm:$0xff]
      %v308 = vld [vmem:[#allocation2 + $0x78] sm:$0xff]
      %v309 = vld [vmem:[%s2] sm:$0x1]
      %v311 = vlaneseq
      %v312 = vshrl.u32 %v311, 7
      %v313 = vsub.s32 0, %v312
      %v314 = vrot.slane %v309, %v313
      %v316 = vadd.f32 %v293, %v314
      %v317 = vadd.f32 %v294, %v314
      %v318 = vadd.f32 %v295, %v314
      %v319 = vadd.f32 %v296, %v314
      %v320 = vadd.f32 %v297, %v314
      %v321 = vadd.f32 %v298, %v314
      %v322 = vadd.f32 %v299, %v314
      %v323 = vadd.f32 %v300, %v314
      %v324 = vadd.f32 %v301, %v314
      %v325 = vadd.f32 %v302, %v314
      %v326 = vadd.f32 %v303, %v314
      %v327 = vadd.f32 %v304, %v314
      %v328 = vadd.f32 %v305, %v314
      %v329 = vadd.f32 %v306, %v314
      %v330 = vadd.f32 %v307, %v314
      %v331 = vadd.f32 %v308, %v314
      %332 = vst [vmem:[#allocation8] sm:$0xff] %v316
      %333 = vst [vmem:[#allocation8 + $0x8] sm:$0xff] %v317
      %334 = vst [vmem:[#allocation8 + $0x10] sm:$0xff] %v318
      %335 = vst [vmem:[#allocation8 + $0x18] sm:$0xff] %v319
      %336 = vst [vmem:[#allocation8 + $0x20] sm:$0xff] %v320
      %337 = vst [vmem:[#allocation8 + $0x28] sm:$0xff] %v321
      %338 = vst [vmem:[#allocation8 + $0x30] sm:$0xff] %v322
      %339 = vst [vmem:[#allocation8 + $0x38] sm:$0xff] %v323
      %340 = vst [vmem:[#allocation8 + $0x40] sm:$0xff] %v324
      %341 = vst [vmem:[#allocation8 + $0x48] sm:$0xff] %v325
      %342 = vst [vmem:[#allocation8 + $0x50] sm:$0xff] %v326
      %343 = vst [vmem:[#allocation8 + $0x58] sm:$0xff] %v327
      %344 = vst [vmem:[#allocation8 + $0x60] sm:$0xff] %v328
      %345 = vst [vmem:[#allocation8 + $0x68] sm:$0xff] %v329
      %346 = vst [vmem:[#allocation8 + $0x70] sm:$0xff] %v330
      %347 = vst [vmem:[#allocation8 + $0x78] sm:$0xff] %v331
    $region29: #{tpu_custom_call.1} parent=1 // pred_fallthru
      _
    // Predicated region
    $region30: #{tpu_custom_call.1} parent=1 // pred_check
      _
    $region31: #{tpu_custom_call.1} parent=1 // pred_check_branch
      %349 = sbr.rel (0) target = $region33
    $region32: #{tpu_custom_call.1} parent=1 // pred_region
      %s351 = ssub.s32 2048, 2048
      %352 = vsyncadd [#allocation5], %s351
      %s353 = sshll.u32 [#allocation8], 4
      %s354 = int_to_ptr.vmem [resolvable:$true] %s353
      %359 = dma.vmem_to_hbm [thread:$0]  %s354, 2048, %s3, [#allocation5], 128, 128, 8
    $region33: #{tpu_custom_call.1} parent=1 // pred_fallthru
      _
    // Predicated region
    $region34: #{tpu_custom_call.1} parent=1 // pred_check
      _
    $region35: #{tpu_custom_call.1} parent=1 // pred_check_branch
      %361 = sbr.rel (0) target = $region37
    $region36: #{tpu_custom_call.1} parent=1 // pred_region
      %362 = dma.done [#allocation5], 2048
    $region37: #{tpu_custom_call.1} parent=1 // pred_fallthru
      _
    %363 = vsyncpa [#allocation4], 1
    %364 = vsyncpa [#allocation7], 1
    %365 = vsyncpa [#allocation5], 1

</llo_original>
